<compile_context>
chip_gen: v5e
topology: v5e:2x2
jax: 0.10.0
libtpu: 0.0.40
codegen_flags: <defaults>
</compile_context>

<pallas_src>
import functools

import jax
import jax.numpy as jnp
from jax.experimental import pallas as pl
from jax.experimental.pallas import tpu as pltpu


# ---------------------------------------------------------------------------
# Shared gate math (runs inside kernels, all f32).
# ---------------------------------------------------------------------------
def _lstm_step_math(x, h, c, wx, wh, b):
    """One LSTMCell update. x:(B,Din) h,c:(B,H) wx:(Din,4H) wh:(H,4H) b:(1,4H)."""
    gates = (jnp.dot(x, wx, preferred_element_type=jnp.float32)
             + jnp.dot(h, wh, preferred_element_type=jnp.float32)
             + b)                                   # VPU bias add, (B, 4H)
    H = c.shape[-1]
    # Full-vreg activations (2 EUP ops), then slice i/f/o from sig and g from tah.
    sig = jax.nn.sigmoid(gates)
    tah = jnp.tanh(gates)
    i_g = sig[:, 0 * H:1 * H]
    f_g = sig[:, 1 * H:2 * H]
    g_g = tah[:, 2 * H:3 * H]
    o_g = sig[:, 3 * H:4 * H]
    c_new = f_g * c + i_g * g_g
    h_new = o_g * jnp.tanh(c_new)
    return h_new, c_new


# ---------------------------------------------------------------------------
# Single-step kernel (matches LSTMNet.forward exactly).
# ---------------------------------------------------------------------------
def _lstm_cell_kernel(x_ref, h_ref, c_ref, wx_ref, wh_ref, b_ref,
                      h_out_ref, c_out_ref):
    h_new, c_new = _lstm_step_math(
        x_ref[...].astype(jnp.float32),
        h_ref[...].astype(jnp.float32),
        c_ref[...].astype(jnp.float32),
        wx_ref[...], wh_ref[...], b_ref[...])
    h_out_ref[...] = h_new.astype(h_out_ref.dtype)
    c_out_ref[...] = c_new.astype(c_out_ref.dtype)


# ---------------------------------------------------------------------------
# Sequence kernel: T steps in one pallas_call, weights resident, state in
# VMEM scratch.  grid = (batch_blocks, T).
# ---------------------------------------------------------------------------
def _lstm_seq_kernel(x_ref, h0_ref, c0_ref, wx_ref, wh_ref, b_ref,
                     hs_out_ref, cs_out_ref, h_scr, c_scr):
    t = pl.program_id(1)

    @pl.when(t == 0)
    def _():
        h_scr[...] = h0_ref[...].astype(jnp.float32)
        c_scr[...] = c0_ref[...].astype(jnp.float32)

    h_new, c_new = _lstm_step_math(
        x_ref[...].astype(jnp.float32),
        h_scr[...], c_scr[...],
        wx_ref[...], wh_ref[...], b_ref[...])

    h_scr[...] = h_new
    c_scr[...] = c_new
    hs_out_ref[...] = h_new.astype(hs_out_ref.dtype)
    cs_out_ref[...] = c_new.astype(cs_out_ref.dtype)


# ---------------------------------------------------------------------------
# One-time parameter packing (parameter-load time, NOT the per-step hot path).
# ---------------------------------------------------------------------------
def pack_lstm_params(w_ih, w_hh, b_ih, b_hh):
    """PyTorch layout: w_ih (4H, Din), w_hh (4H, H), b_* (4H,).

    Returns (wx, wh, b): wx (Din, 4H), wh (H, 4H), b (1, 4H) — bias kept as a
    separate f32 row so it is added on the VPU (bf16-safe), not via the MXU.
    """
    wx = jnp.transpose(w_ih).astype(jnp.float32)
    wh = jnp.transpose(w_hh).astype(jnp.float32)
    b = (b_ih + b_hh).astype(jnp.float32)[None, :]
    return wx, wh, b


def _cost_estimate(B, d_in, H, steps):
    flops = steps * (2 * B * (d_in + H) * 4 * H + 10 * B * H)
    trans = steps * (2 * B * 4 * H + B * H)
    byts = 4 * (steps * (B * d_in + 2 * B * H) + 2 * B * H
                + (d_in + H + 1) * 4 * H)
    return pl.CostEstimate(flops=int(flops), transcendentals=int(trans),
                           bytes_accessed=int(byts))


# ---------------------------------------------------------------------------
# Wrappers.
# ---------------------------------------------------------------------------
@jax.jit
def lstm_net_forward(conv_feature, hidden, params):
    """Pallas equivalent of LSTMNet.forward (single step).

    conv_feature: (B, hidden_size + n_actions + 1)
    hidden:       (h0, c0), each (B, hidden_size)
    params:       (wx, wh, b) from pack_lstm_params
    returns (h_new, c_new)  -- state kept in f32 (no truncating cast).
    """
    h0, c0 = hidden
    wx, wh, b = params
    B, H = h0.shape
    d_in = conv_feature.shape[-1]

    vmem = pl.BlockSpec(memory_space=pltpu.MemorySpace.VMEM)
    h_new, c_new = pl.pallas_call(
        _lstm_cell_kernel,
        out_shape=(jax.ShapeDtypeStruct((B, H), jnp.float32),
                   jax.ShapeDtypeStruct((B, H), jnp.float32)),
        in_specs=[vmem] * 6,
        out_specs=(vmem, vmem),
        cost_estimate=_cost_estimate(B, d_in, H, 1),
    )(conv_feature, h0, c0, wx, wh, b)
    return h_new, c_new


@functools.partial(jax.jit, static_argnames=("batch_block",))
def lstm_net_forward_sequence(xs, hidden, params, *, batch_block=None):
    """T-step recurrence in ONE pallas_call (the structural perf win).

    xs:      (T, B, hidden_size + n_actions + 1)
    hidden:  (h0, c0), each (B, hidden_size)
    params:  (wx, wh, b)
    returns (h_seq, c_seq), each (T, B, hidden_size); last step == final state.
    """
    h0, c0 = hidden
    wx, wh, b = params
    T, B, d_in = xs.shape
    H = h0.shape[-1]
    bb = B if batch_block is None else batch_block
    assert B % bb == 0

    grid = (B // bb, T)
    h_seq, c_seq = pl.pallas_call(
        _lstm_seq_kernel,
        out_shape=(jax.ShapeDtypeStruct((T, B, H), jnp.float32),
                   jax.ShapeDtypeStruct((T, B, H), jnp.float32)),
        grid_spec=pltpu.PrefetchScalarGridSpec(
            num_scalar_prefetch=0,
            grid=grid,
            in_specs=[
                pl.BlockSpec((None, bb, d_in), lambda bi, t: (t, bi, 0)),  # xs[t]
                pl.BlockSpec((bb, H), lambda bi, t: (bi, 0)),              # h0
                pl.BlockSpec((bb, H), lambda bi, t: (bi, 0)),              # c0
                pl.BlockSpec((d_in, 4 * H), lambda bi, t: (0, 0)),         # wx (resident)
                pl.BlockSpec((H, 4 * H), lambda bi, t: (0, 0)),            # wh (resident)
                pl.BlockSpec((1, 4 * H), lambda bi, t: (0, 0)),            # bias (resident)
            ],
            out_specs=[
                pl.BlockSpec((None, bb, H), lambda bi, t: (t, bi, 0)),
                pl.BlockSpec((None, bb, H), lambda bi, t: (t, bi, 0)),
            ],
            scratch_shapes=[pltpu.VMEM((bb, H), jnp.float32),   # h carry
                            pltpu.VMEM((bb, H), jnp.float32)],  # c carry
        ),
        compiler_params=pltpu.CompilerParams(
            dimension_semantics=("parallel", "arbitrary")),
        cost_estimate=_cost_estimate(B, d_in, H, T),
    )(xs, h0, c0, wx, wh, b)
    return h_seq, c_seq


# ---------------------------------------------------------------------------
# Pure-JAX reference (PyTorch LSTMCell semantics) for verification.
# ---------------------------------------------------------------------------
def _reference_lstm_cell(x, h0, c0, w_ih, w_hh, b_ih, b_hh):
    gates = x @ w_ih.T + b_ih + h0 @ w_hh.T + b_hh
    H = h0.shape[-1]
    i = jax.nn.sigmoid(gates[:, 0 * H:1 * H])
    f = jax.nn.sigmoid(gates[:, 1 * H:2 * H])
    g = jnp.tanh(gates[:, 2 * H:3 * H])
    o = jax.nn.sigmoid(gates[:, 3 * H:4 * H])
    c_new = f * c0 + i * g
    h_new = o * jnp.tanh(c_new)
    return h_new, c_new


if __name__ == "__main__":
    # Small shapes consistent with the module; batch rounded up to a full
    # f32 sublane (perf feedback): batch=8, n_actions=4, hidden_size=32.
    B = 8
    n_actions = 4
    hidden_size = 32
    T = 8
    d_in = hidden_size + n_actions + 1  # = 37

    key = jax.random.PRNGKey(0)
    k_x, k_xs, k_h, k_c, k_wih, k_whh, k_bih, k_bhh = jax.random.split(key, 8)

    bound = 1.0 / jnp.sqrt(jnp.float32(hidden_size))
    w_ih = jax.random.uniform(k_wih, (4 * hidden_size, d_in),
                              jnp.float32, -bound, bound)
    w_hh = jax.random.uniform(k_whh, (4 * hidden_size, hidden_size),
                              jnp.float32, -bound, bound)
    b_ih = jax.random.uniform(k_bih, (4 * hidden_size,),
                              jnp.float32, -bound, bound)
    b_hh = jax.random.uniform(k_bhh, (4 * hidden_size,),
                              jnp.float32, -bound, bound)

    conv_feature = jax.random.normal(k_x, (B, d_in), jnp.float32)
    xs = jax.random.normal(k_xs, (T, B, d_in), jnp.float32)
    h0 = jax.random.normal(k_h, (B, hidden_size), jnp.float32)
    c0 = jax.random.normal(k_c, (B, hidden_size), jnp.float32)

    # One-time packing (parameter-load time), kept off the per-step hot path.
    params = jax.block_until_ready(pack_lstm_params(w_ih, w_hh, b_ih, b_hh))

    # --- single step (module semantics) -----------------------------------
    h1, c1 = lstm_net_forward(conv_feature, (h0, c0), params)
    jax.block_until_ready((h1, c1))
    h_ref, c_ref = _reference_lstm_cell(conv_feature, h0, c0,
                                        w_ih, w_hh, b_ih, b_hh)
    assert jnp.allclose(h1, h_ref, atol=1e-5, rtol=1e-5)
    assert jnp.allclose(c1, c_ref, atol=1e-5, rtol=1e-5)

    # --- T-step recurrence in one pallas_call ------------------------------
    h_seq, c_seq = lstm_net_forward_sequence(xs, (h0, c0), params)
    jax.block_until_ready((h_seq, c_seq))

    h_r, c_r = h0, c0
    h_ref_seq = []
    for t in range(T):
        h_r, c_r = _reference_lstm_cell(xs[t], h_r, c_r, w_ih, w_hh, b_ih, b_hh)
        h_ref_seq.append(h_r)
    h_ref_seq = jnp.stack(h_ref_seq, axis=0)
    assert jnp.allclose(h_seq, h_ref_seq, atol=1e-4, rtol=1e-4)
    assert jnp.allclose(c_seq[-1], c_r, atol=1e-4, rtol=1e-4)

    print("KERNEL_OK")
</pallas_src>

<mosaic_0001>
module attributes {stable_mosaic.version = 11 : i64} {
  func.func @_lstm_cell_kernel(%arg0: memref<8x37xf32, #tpu.memory_space<vmem>>, %arg1: memref<8x32xf32, #tpu.memory_space<vmem>>, %arg2: memref<8x32xf32, #tpu.memory_space<vmem>>, %arg3: memref<37x128xf32, #tpu.memory_space<vmem>>, %arg4: memref<32x128xf32, #tpu.memory_space<vmem>>, %arg5: memref<1x128xf32, #tpu.memory_space<vmem>>, %arg6: memref<8x32xf32, #tpu.memory_space<vmem>>, %arg7: memref<8x32xf32, #tpu.memory_space<vmem>>) attributes {dimension_semantics = [], scalar_prefetch = 0 : i64, scratch_operands = 0 : i64, tpu.core_type = #tpu.core_type<tc>} {
    %c0 = arith.constant 0 : index
    %c0_0 = arith.constant 0 : index
    %0 = vector.load %arg0[%c0, %c0_0] : memref<8x37xf32, #tpu.memory_space<vmem>>, vector<8x37xf32>
    %c0_1 = arith.constant 0 : index
    %c0_2 = arith.constant 0 : index
    %1 = vector.load %arg1[%c0_1, %c0_2] : memref<8x32xf32, #tpu.memory_space<vmem>>, vector<8x32xf32>
    %c0_3 = arith.constant 0 : index
    %c0_4 = arith.constant 0 : index
    %2 = vector.load %arg2[%c0_3, %c0_4] : memref<8x32xf32, #tpu.memory_space<vmem>>, vector<8x32xf32>
    %c0_5 = arith.constant 0 : index
    %c0_6 = arith.constant 0 : index
    %3 = vector.load %arg3[%c0_5, %c0_6] : memref<37x128xf32, #tpu.memory_space<vmem>>, vector<37x128xf32>
    %c0_7 = arith.constant 0 : index
    %c0_8 = arith.constant 0 : index
    %4 = vector.load %arg4[%c0_7, %c0_8] : memref<32x128xf32, #tpu.memory_space<vmem>>, vector<32x128xf32>
    %c0_9 = arith.constant 0 : index
    %c0_10 = arith.constant 0 : index
    %5 = vector.load %arg5[%c0_9, %c0_10] : memref<1x128xf32, #tpu.memory_space<vmem>>, vector<1x128xf32>
    %cst = arith.constant dense<0.000000e+00> : vector<8x128xf32>
    %6 = tpu.matmul %0, %3, %cst {dimension_numbers = #tpu.dot_dimension_numbers<[1], [0], [0], [1], [0, 0, 1, 1], [], []>} : vector<8x37xf32>, vector<37x128xf32>, vector<8x128xf32> -> vector<8x128xf32>
    %cst_11 = arith.constant dense<0.000000e+00> : vector<8x128xf32>
    %7 = tpu.matmul %1, %4, %cst_11 {dimension_numbers = #tpu.dot_dimension_numbers<[1], [0], [0], [1], [0, 0, 1, 1], [], []>} : vector<8x32xf32>, vector<32x128xf32>, vector<8x128xf32> -> vector<8x128xf32>
    %8 = arith.addf %6, %7 : vector<8x128xf32>
    %9 = vector.broadcast %5 : vector<1x128xf32> to vector<8x128xf32>
    %10 = arith.addf %8, %9 : vector<8x128xf32>
    %11 = arith.negf %10 : vector<8x128xf32>
    %12 = math.exp %11 : vector<8x128xf32>
    %cst_12 = arith.constant 1.000000e+00 : f32
    %13 = vector.broadcast %cst_12 : f32 to vector<8x128xf32>
    %14 = arith.addf %13, %12 : vector<8x128xf32>
    %15 = arith.divf %13, %14 : vector<8x128xf32>
    %16 = math.tanh %10 : vector<8x128xf32>
    %17 = vector.extract_strided_slice %15 {offsets = [0, 0], sizes = [8, 32], strides = [1, 1]} : vector<8x128xf32> to vector<8x32xf32>
    %18 = vector.extract_strided_slice %15 {offsets = [0, 32], sizes = [8, 32], strides = [1, 1]} : vector<8x128xf32> to vector<8x32xf32>
    %19 = vector.extract_strided_slice %16 {offsets = [0, 64], sizes = [8, 32], strides = [1, 1]} : vector<8x128xf32> to vector<8x32xf32>
    %20 = vector.extract_strided_slice %15 {offsets = [0, 96], sizes = [8, 32], strides = [1, 1]} : vector<8x128xf32> to vector<8x32xf32>
    %21 = arith.mulf %18, %2 : vector<8x32xf32>
    %22 = arith.mulf %17, %19 : vector<8x32xf32>
    %23 = arith.addf %21, %22 : vector<8x32xf32>
    %24 = math.tanh %23 : vector<8x32xf32>
    %25 = arith.mulf %20, %24 : vector<8x32xf32>
    %c0_13 = arith.constant 0 : index
    %c0_14 = arith.constant 0 : index
    %26 = vector.load %arg6[%c0_13, %c0_14] : memref<8x32xf32, #tpu.memory_space<vmem>>, vector<8x32xf32>
    tpu.vector_store %arg6[%c0_13, %c0_14], %25 {strides = array<i32>} : memref<8x32xf32, #tpu.memory_space<vmem>>, vector<8x32xf32>,
    %c0_15 = arith.constant 0 : index
    %c0_16 = arith.constant 0 : index
    %27 = vector.load %arg7[%c0_15, %c0_16] : memref<8x32xf32, #tpu.memory_space<vmem>>, vector<8x32xf32>
    tpu.vector_store %arg7[%c0_15, %c0_16], %23 {strides = array<i32>} : memref<8x32xf32, #tpu.memory_space<vmem>>, vector<8x32xf32>,
    return
  }
}

</mosaic_0001>

<llo_original>
// kernel: lstm_net_forward.1
$region0: #{lstm_net_forward.1}
  #allocation0 [shape = 'u32[]', space=smem, size = 0x4, offset = 0x4, fixed_abs, tag = 'smem constant byte address 0x4 - core index']
  #allocation1 [shape = 'u32[72,128]{1,0:T(1,128)}', space=vmem, size = 0x9000, scoped, tag = 'internal scratch']
  %s0 = inlined_call_operand.hbm [shape: f32[8,37], index: 0, kind: input, shape index: {}]
  %s1 = inlined_call_operand.hbm [shape: f32[8,32], index: 1, kind: input, shape index: {}]
  %s2 = inlined_call_operand.hbm [shape: f32[8,32], index: 2, kind: input, shape index: {}]
  %s3 = inlined_call_operand.hbm [shape: f32[37,128], index: 3, kind: input, shape index: {}]
  %s4 = inlined_call_operand.hbm [shape: f32[32,128], index: 4, kind: input, shape index: {}]
  %s5 = inlined_call_operand.vmem [shape: f32[1,128], index: 5, kind: input, shape index: {}]
  %s6 = inlined_call_operand.hbm [shape: f32[8,32], index: 6, kind: output, shape index: {0}]
  %s7 = inlined_call_operand.hbm [shape: f32[8,32], index: 7, kind: output, shape index: {1}]
  %8 = xla_tuple %s6, %s7
  %s9 = sld [smem:[#allocation0]]
  $region62: #{lstm_net_forward.1} parent=0
    _
  %s11 = ssub.s32 1, %s9
  %s12 = scalar_select 0, %s11, %s9
  $region1: #{lstm_net_forward.1} parent=0
    #allocation2 [shape = 'u8[4096]{0}', space=vmem, size = 0x1000, scoped, tag = 'input window, operand 0, single buffered']
    #allocation3 [shape = 's32[1]{0}', space=sflag, size = 0x4, scoped, tag = 'scoped memory for lstm_net_forward.1']
    #allocation4 [shape = 's32[1]{0}', space=sflag, size = 0x4, scoped, tag = 'scoped memory for lstm_net_forward.1']
    #allocation5 [shape = 'u8[4096]{0}', space=vmem, size = 0x1000, scoped, tag = 'input window, operand 1, single buffered']
    #allocation6 [shape = 's32[1]{0}', space=sflag, size = 0x4, scoped, tag = 'scoped memory for lstm_net_forward.1']
    #allocation7 [shape = 'u8[4096]{0}', space=vmem, size = 0x1000, scoped, tag = 'input window, operand 2, single buffered']
    #allocation8 [shape = 'u8[20480]{0}', space=vmem, size = 0x5000, scoped, tag = 'input window, operand 3, single buffered']
    #allocation9 [shape = 's32[1]{0}', space=sflag, size = 0x4, scoped, tag = 'scoped memory for lstm_net_forward.1']
    #allocation10 [shape = 'u8[16384]{0}', space=vmem, size = 0x4000, scoped, tag = 'input window, operand 4, single buffered']
    #allocation11 [shape = 'u8[4096]{0}', space=vmem, size = 0x1000, scoped, tag = 'output window, operand 0, single buffered']
    #allocation12 [shape = 'u8[4096]{0}', space=vmem, size = 0x1000, scoped, tag = 'output window, operand 1, single buffered']
    #allocation13 [shape = 's32[1]{0}', space=sflag, size = 0x4, scoped, tag = 'scoped memory for lstm_net_forward.1']
    %13 = vsyncpa [#allocation3], 0
    %14 = vsyncpa [#allocation6], 0
    %15 = vsyncpa [#allocation9], 0
    %16 = vsyncpa [#allocation4], 0
    %17 = vsyncpa [#allocation13], 0
    // Predicated region
    $region2: #{lstm_net_forward.1} parent=1 // pred_check
      _
    $region3: #{lstm_net_forward.1} parent=1 // pred_check_branch
      %19 = sbr.rel (0) target = $region5
    $region4: #{lstm_net_forward.1} parent=1 // pred_region
      %21 = vsyncadd [#allocation3], 0
      %s23 = sshll.u32 %s0, 4
      %s24 = int_to_ptr.hbm [resolvable:$true] %s23
      %s25 = sshll.u32 [#allocation2], 4
      %s26 = int_to_ptr.vmem [resolvable:$true] %s25
      %28 = dma.hbm_to_vmem [thread:$0]  %s24, 128, %s26, [#allocation3]
    $region5: #{lstm_net_forward.1} parent=1 // pred_fallthru
      _
    // Predicated region
    $region6: #{lstm_net_forward.1} parent=1 // pred_check
      _
    $region7: #{lstm_net_forward.1} parent=1 // pred_check_branch
      %30 = sbr.rel (0) target = $region9
    $region8: #{lstm_net_forward.1} parent=1 // pred_region
      %32 = vsyncadd [#allocation6], 0
      %s34 = sshll.u32 %s1, 4
      %s35 = int_to_ptr.hbm [resolvable:$true] %s34
      %s36 = sshll.u32 [#allocation5], 4
      %s37 = int_to_ptr.vmem [resolvable:$true] %s36
      %39 = dma.hbm_to_vmem [thread:$0]  %s35, 128, %s37, [#allocation6]
    $region9: #{lstm_net_forward.1} parent=1 // pred_fallthru
      _
    // Predicated region
    $region10: #{lstm_net_forward.1} parent=1 // pred_check
      _
    $region11: #{lstm_net_forward.1} parent=1 // pred_check_branch
      %41 = sbr.rel (0) target = $region13
    $region12: #{lstm_net_forward.1} parent=1 // pred_region
      %43 = vsyncadd [#allocation6], 0
      %s45 = sshll.u32 %s2, 4
      %s46 = int_to_ptr.hbm [resolvable:$true] %s45
      %s47 = sshll.u32 [#allocation7], 4
      %s48 = int_to_ptr.vmem [resolvable:$true] %s47
      %50 = dma.hbm_to_vmem [thread:$0]  %s46, 128, %s48, [#allocation6]
    $region13: #{lstm_net_forward.1} parent=1 // pred_fallthru
      _
    // Predicated region
    $region14: #{lstm_net_forward.1} parent=1 // pred_check
      _
    $region15: #{lstm_net_forward.1} parent=1 // pred_check_branch
      %52 = sbr.rel (0) target = $region17
    $region16: #{lstm_net_forward.1} parent=1 // pred_region
      %54 = vsyncadd [#allocation9], 0
      %s55 = sshll.u32 %s3, 4
      %s56 = int_to_ptr.hbm [resolvable:$true] %s55
      %s57 = sshll.u32 [#allocation8], 4
      %s58 = int_to_ptr.vmem [resolvable:$true] %s57
      %63 = dma.hbm_to_vmem [thread:$0]  %s56, 640, %s58, [#allocation9], 128, 128, 8
    $region17: #{lstm_net_forward.1} parent=1 // pred_fallthru
      _
    // Predicated region
    $region18: #{lstm_net_forward.1} parent=1 // pred_check
      _
    $region19: #{lstm_net_forward.1} parent=1 // pred_check_branch
      %65 = sbr.rel (0) target = $region21
    $region20: #{lstm_net_forward.1} parent=1 // pred_region
      %67 = vsyncadd [#allocation9], 0
      %s68 = sshll.u32 %s4, 4
      %s69 = int_to_ptr.hbm [resolvable:$true] %s68
      %s70 = sshll.u32 [#allocation10], 4
      %s71 = int_to_ptr.vmem [resolvable:$true] %s70
      %76 = dma.hbm_to_vmem [thread:$0]  %s69, 512, %s71, [#allocation9], 128, 128, 8
    $region21: #{lstm_net_forward.1} parent=1 // pred_fallthru
      _
    // Predicated region
    $region22: #{lstm_net_forward.1} parent=1 // pred_check
      _
    $region23: #{lstm_net_forward.1} parent=1 // pred_check_branch
      %78 = sbr.rel (0) target = $region25
    $region24: #{lstm_net_forward.1} parent=1 // pred_region
      _
    $region25: #{lstm_net_forward.1} parent=1 // pred_fallthru
      _
    // Predicated region
    $region26: #{lstm_net_forward.1} parent=1 // pred_check
      _
    $region27: #{lstm_net_forward.1} parent=1 // pred_check_branch
      %80 = sbr.rel (0) target = $region29
    $region28: #{lstm_net_forward.1} parent=1 // pred_region
      %82 = dma.done [#allocation3], 128
    $region29: #{lstm_net_forward.1} parent=1 // pred_fallthru
      _
    // Predicated region
    $region30: #{lstm_net_forward.1} parent=1 // pred_check
      _
    $region31: #{lstm_net_forward.1} parent=1 // pred_check_branch
      %84 = sbr.rel (0) target = $region33
    $region32: #{lstm_net_forward.1} parent=1 // pred_region
      %86 = dma.done [#allocation6], 128
    $region33: #{lstm_net_forward.1} parent=1 // pred_fallthru
      _
    // Predicated region
    $region34: #{lstm_net_forward.1} parent=1 // pred_check
      _
    $region35: #{lstm_net_forward.1} parent=1 // pred_check_branch
      %88 = sbr.rel (0) target = $region37
    $region36: #{lstm_net_forward.1} parent=1 // pred_region
      %90 = dma.done [#allocation6], 128
    $region37: #{lstm_net_forward.1} parent=1 // pred_fallthru
      _
    // Predicated region
    $region38: #{lstm_net_forward.1} parent=1 // pred_check
      _
    $region39: #{lstm_net_forward.1} parent=1 // pred_check_branch
      %92 = sbr.rel (0) target = $region41
    $region40: #{lstm_net_forward.1} parent=1 // pred_region
      %94 = dma.done [#allocation9], 640
    $region41: #{lstm_net_forward.1} parent=1 // pred_fallthru
      _
    // Predicated region
    $region42: #{lstm_net_forward.1} parent=1 // pred_check
      _
    $region43: #{lstm_net_forward.1} parent=1 // pred_check_branch
      %96 = sbr.rel (0) target = $region45
    $region44: #{lstm_net_forward.1} parent=1 // pred_region
      %98 = dma.done [#allocation9], 512
    $region45: #{lstm_net_forward.1} parent=1 // pred_fallthru
      _
    %v99 = vld [vmem:[#allocation2] sm:$0xff]
    %v100 = vld [vmem:[#allocation5] sm:$0xff]
    %v101 = vld [vmem:[#allocation7] sm:$0xff]
    %v102 = vld [vmem:[#allocation8] sm:$0xff]
    %v103 = vld [vmem:[#allocation8 + $0x8] sm:$0xff]
    %v104 = vld [vmem:[#allocation8 + $0x10] sm:$0xff]
    %v105 = vld [vmem:[#allocation8 + $0x18] sm:$0xff]
    %v106 = vld [vmem:[#allocation8 + $0x20] sm:$0x1f]
    %v107 = vld [vmem:[#allocation10] sm:$0xff]
    %v108 = vld [vmem:[#allocation10 + $0x8] sm:$0xff]
    %v109 = vld [vmem:[#allocation10 + $0x10] sm:$0xff]
    %v110 = vld [vmem:[#allocation10 + $0x18] sm:$0xff]
    %v111 = vld [vmem:[%s5] sm:$0x1]
    %vm112 = vcmask 261120
    %v114 = vsel %vm112, %v100, 0
    %116 = vmatpush.msra.mxu0 0.0
    %117 = vmatpush.msra.mxu0 0.0
    %118 = vmatpush.msra.mxu0 0.0
    %119 = vmatpush.msra.mxu0 0.0
    %120 = vmatpush.msra.mxu0 0.0
    %121 = vmatpush.msra.mxu0 0.0
    %122 = vmatpush.msra.mxu0 0.0
    %123 = vmatpush.msra.mxu0 0.0
    %124 = vmatpush.msra.mxu0 0.0
    %125 = vmatpush.msra.mxu0 0.0
    %126 = vmatpush.msra.mxu0 0.0
    %127 = vmatpush.msra.mxu0 0.0
    %128 = vmatpush.msra.mxu0 %v110
    %129 = vmatpush.msra.mxu0 %v109
    %130 = vmatpush.msra.mxu0 %v108
    %131 = vmatpush.msra.mxu0 %v107
    %132 = vmatmul.f32.gmra.mxu0 %v114
    %v133 = vpop.f32.mrf.mxu0
    %v134 = vadd.f32 0.0, %v133
    %135 = vdwg.mxu0
    %vm136 = vcmask 302080
    %v138 = vsel %vm136, %v99, 0
    %vm140 = vcmask 1044480
    %v142 = vsel %vm140, %v106, 0
    %144 = vmatpush.msra.mxu0 0.0
    %145 = vmatpush.msra.mxu0 0.0
    %146 = vmatpush.msra.mxu0 0.0
    %147 = vmatpush.msra.mxu0 0.0
    %148 = vmatpush.msra.mxu0 0.0
    %149 = vmatpush.msra.mxu0 0.0
    %150 = vmatpush.msra.mxu0 0.0
    %151 = vmatpush.msra.mxu0 0.0
    %152 = vmatpush.msra.mxu0 0.0
    %153 = vmatpush.msra.mxu0 0.0
    %154 = vmatpush.msra.mxu0 0.0
    %155 = vmatpush.msra.mxu0 %v142
    %156 = vmatpush.msra.mxu0 %v105
    %157 = vmatpush.msra.mxu0 %v104
    %158 = vmatpush.msra.mxu0 %v103
    %159 = vmatpush.msra.mxu0 %v102
    %160 = vmatmul.f32.gmra.mxu0 %v138
    %v161 = vpop.f32.mrf.mxu0
    %v162 = vadd.f32 %v134, %v161
    %163 = vdwg.mxu0
    %v165 = vperm.slane %v111, 0
    %v167 = vadd.f32 %v162, %v165
    %v168 = vxor.u32 %v167, 2147483648
    %v169 = vmul.f32 %v168, 1.442695
    %v170 = vpow.pop %v169
    %v171 = vadd.f32 %v170, 1.0
    %v172 = vrcp.pop %v171
    %v173 = vmul.f32 %v171, %v172
    %v174 = vsub.f32 1.0, %v173
    %v175 = vmul.f32 %v172, %v174
    %v176 = vadd.f32 %v172, %v175
    %vm177 = vweird.f32 %v171
    %vm178 = vweird.f32 %v172
    %vm179 = vmor %vm177, %vm178
    %v180 = vsel %vm179, %v172, %v176
    %v181 = vand.u32 2147483647, %v171
    %vm182 = vcmp.eq.f32.partialorder %v181, 8.507059e+37
    %v183 = vand.u32 %v171, 2147483648
    %v184 = vor.u32 1.1754944e-38, %v183
    %v185 = vsel %vm182, %v184, %v180
    %v186 = vmul.f32 1.0, %v185
    %v187 = vtanh.pop %v167
    %189 = vrot.lane.b32.xlu0 %v101, 32
    %v190 = vpop.permute.xlu0 %189
    %v192 = vmul.f32 %v186, %v190
    %194 = vrot.lane.b32.xlu0 %v187, 64
    %v195 = vpop.permute.xlu0 %194
    %v197 = vmul.f32 %v186, %v195
    %199 = vrot.lane.b32.xlu0 %v197, 32
    %v200 = vpop.permute.xlu0 %199
    %v202 = vadd.f32 %v192, %v200
    %v203 = vtanh.pop %v202
    %205 = vrot.lane.b32.xlu0 %v203, 64
    %v206 = vpop.permute.xlu0 %205
    %v208 = vmul.f32 %v186, %v206
    %210 = vrot.lane.b32.xlu0 %v208, 32
    %v211 = vpop.permute.xlu0 %210
    %213 = vst.msk [vmem:[#allocation11] sm:$0xff] %vm112, %v211
    %215 = vrot.lane.b32.xlu0 %v202, 96
    %v216 = vpop.permute.xlu0 %215
    %218 = vst.msk [vmem:[#allocation12] sm:$0xff] %vm112, %v216
    // Predicated region
    $region46: #{lstm_net_forward.1} parent=1 // pred_check
      _
    $region47: #{lstm_net_forward.1} parent=1 // pred_check_branch
      %220 = sbr.rel (0) target = $region49
    $region48: #{lstm_net_forward.1} parent=1 // pred_region
      %222 = vsyncadd [#allocation4], 0
      %s224 = sshll.u32 [#allocation11], 4
      %s225 = int_to_ptr.vmem [resolvable:$true] %s224
      %s226 = sshll.u32 %s6, 4
      %s227 = int_to_ptr.hbm [resolvable:$true] %s226
      %229 = dma.vmem_to_hbm [thread:$0]  %s225, 128, %s227, [#allocation4]
    $region49: #{lstm_net_forward.1} parent=1 // pred_fallthru
      _
    // Predicated region
    $region50: #{lstm_net_forward.1} parent=1 // pred_check
      _
    $region51: #{lstm_net_forward.1} parent=1 // pred_check_branch
      %231 = sbr.rel (0) target = $region53
    $region52: #{lstm_net_forward.1} parent=1 // pred_region
      %233 = vsyncadd [#allocation13], 0
      %s235 = sshll.u32 [#allocation12], 4
      %s236 = int_to_ptr.vmem [resolvable:$true] %s235
      %s237 = sshll.u32 %s7, 4
      %s238 = int_to_ptr.hbm [resolvable:$true] %s237
      %240 = dma.vmem_to_hbm [thread:$0]  %s236, 128, %s238, [#allocation13]
    $region53: #{lstm_net_forward.1} parent=1 // pred_fallthru
      _
    // Predicated region
    $region54: #{lstm_net_forward.1} parent=1 // pred_check
      _
    $region55: #{lstm_net_forward.1} parent=1 // pred_check_branch
      %242 = sbr.rel (0) target = $region57
    $region56: #{lstm_net_forward.1} parent=1 // pred_region
      %244 = dma.done [#allocation4], 128
    $region57: #{lstm_net_forward.1} parent=1 // pred_fallthru
      _
    // Predicated region
    $region58: #{lstm_net_forward.1} parent=1 // pred_check
      _
    $region59: #{lstm_net_forward.1} parent=1 // pred_check_branch
      %246 = sbr.rel (0) target = $region61
    $region60: #{lstm_net_forward.1} parent=1 // pred_region
      %248 = dma.done [#allocation13], 128
    $region61: #{lstm_net_forward.1} parent=1 // pred_fallthru
      _
    %249 = vsyncpa [#allocation3], 1
    %250 = vsyncpa [#allocation6], 1
    %251 = vsyncpa [#allocation9], 1
    %252 = vsyncpa [#allocation4], 1
    %253 = vsyncpa [#allocation13], 1

</llo_original>
